<compile_context>
chip_gen: v5e
topology: v5e:2x2
jax: 0.10.0
libtpu: 0.0.40
codegen_flags: <defaults>
</compile_context>

<pallas_src>
import math

import jax
import jax.numpy as jnp
from jax import lax
from jax.experimental import pallas as pl
from jax.experimental.pallas import tpu as pltpu  # noqa: F401  (kept for scale-up knobs)


def gru_forward_kernel(x_ref, p_ref, out_ref):
    B, T, F = x_ref.shape
    G = p_ref.shape[1]          # 3 * hidden
    H = G // 3
    E = 2 * H                   # emb_size

    # ---- Static views into the single packed parameter slab (see pack_params for layout).
    p = p_ref[...]
    wih_f = p[:F, :]                        # (F, 3H)
    wih_b = p[F:2 * F, :]                   # (F, 3H)
    whh_f = p[2 * F:2 * F + H, :]           # (H, 3H)
    wf0 = 2 * F + H
    fc_w = p[wf0:wf0 + E, :E]               # (E, E)
    pred_w = p[wf0 + E:wf0 + 2 * E, :E]     # (E, E)
    b0 = wf0 + 2 * E
    bih_f = p[b0:b0 + 1, :]                 # (1, 3H)  r/z parts of bhh_f pre-folded
    bih_b = p[b0 + 1:b0 + 2, :]             # (1, 3H)  r/z parts of bhh_b pre-folded
    bhh_fn = p[b0 + 2:b0 + 3, :H]           # (1, H)   n-gate recurrent bias, forward
    bhh_bn = p[b0 + 3:b0 + 4, :H]           # (1, H)   n-gate recurrent bias, backward
    fc_b = p[b0 + 4:b0 + 5, :E]
    bn_g = p[b0 + 5:b0 + 6, :E]
    bn_b = p[b0 + 6:b0 + 7, :E]
    pred_b = p[b0 + 7:b0 + 8, :E]

    # ---- Hoisted input projections (off the serial chain).
    x = x_ref[...]
    # t-major LHS: one-time sublane concat so per-step gate slices below are leading-axis.
    x_tm = jnp.concatenate([x[:, t, :] for t in range(T)], axis=0)          # (T*B, F)
    gi_f = jnp.dot(x_tm, wih_f, preferred_element_type=jnp.float32) + bih_f  # (T*B, 3H)
    # Reverse direction: only the t = T-1 state is used -> single-step projection only.
    gi_b = (jnp.dot(x[:, T - 1, :], wih_b, preferred_element_type=jnp.float32)
            + bih_b)                                                          # (B, 3H)

    # ---- Forward recurrence, fully unrolled (T small & static): only h@whh_f + gate math
    #      stays on the serial chain (all biases except the n-gate bhh already folded in).
    h = jnp.zeros((B, H), jnp.float32)
    for t in range(T):
        gi = gi_f[t * B:(t + 1) * B, :]                                       # (B, 3H)
        gh = jnp.dot(h, whh_f, preferred_element_type=jnp.float32)
        r = jax.nn.sigmoid(gi[:, :H] + gh[:, :H])
        z = jax.nn.sigmoid(gi[:, H:2 * H] + gh[:, H:2 * H])
        n = jnp.tanh(gi[:, 2 * H:] + r * (gh[:, 2 * H:] + bhh_fn))
        h = (1.0 - z) * n + z * h

    # ---- Reverse-direction state at T-1 from h0 = 0: h@whh_b == 0 exactly.
    r_b = jax.nn.sigmoid(gi_b[:, :H])
    z_b = jax.nn.sigmoid(gi_b[:, H:2 * H])
    n_b = jnp.tanh(gi_b[:, 2 * H:] + r_b * bhh_bn)
    h_bwd = (1.0 - z_b) * n_b                                                 # + z_b * 0

    # ---- fc on [h_fwd ; h_bwd] as a split matmul (avoids a lane-dim concatenate).
    y = (jnp.dot(h, fc_w[:H, :], preferred_element_type=jnp.float32)
         + jnp.dot(h_bwd, fc_w[H:, :], preferred_element_type=jnp.float32)
         + fc_b)                                                              # (B, E)

    # ---- BatchNorm1d, training mode: batch mean / biased variance, eps=1e-5, affine.
    mean = jnp.mean(y, axis=0, keepdims=True)
    var = jnp.mean((y - mean) ** 2, axis=0, keepdims=True)
    y = (y - mean) * lax.rsqrt(var + 1e-5) * bn_g + bn_b

    # ---- predictor
    out = jnp.dot(y, pred_w, preferred_element_type=jnp.float32) + pred_b
    out_ref[...] = out.astype(out_ref.dtype)


def pack_params(params):
    """Pack all weights/biases into ONE f32 slab (done once, outside the per-call path).

    Row layout (G = 3H columns; narrower pieces zero-padded on the lane axis):
      [0, F)            wih_f
      [F, 2F)           wih_b
      [2F, 2F+H)        whh_f
      [.., +E)          fc_w      (cols :E)
      [.., +E)          pred_w    (cols :E)
      8 bias rows: bih_f(+bhh_f r/z), bih_b(+bhh_b r/z), bhh_f_n, bhh_b_n,
                   fc_b, bn_gamma, bn_beta, pred_b
    """
    H = params["whh_f"].shape[0]
    G = 3 * H

    # Fold r/z-gate recurrent biases into the hoisted input-projection biases.
    zeros_n = jnp.zeros((1, H), jnp.float32)
    bih_f_fold = params["bih_f"] + jnp.concatenate(
        [params["bhh_f"][:, :2 * H], zeros_n], axis=1)
    bih_b_fold = params["bih_b"] + jnp.concatenate(
        [params["bhh_b"][:, :2 * H], zeros_n], axis=1)

    def pad(a):
        return jnp.pad(a, ((0, 0), (0, G - a.shape[1])))

    rows = [
        params["wih_f"],
        params["wih_b"],
        params["whh_f"],
        pad(params["fc_w"]),
        pad(params["pred_w"]),
        bih_f_fold,
        bih_b_fold,
        pad(params["bhh_f"][:, 2 * H:]),
        pad(params["bhh_b"][:, 2 * H:]),
        pad(params["fc_b"]),
        pad(params["bn_g"]),
        pad(params["bn_b"]),
        pad(params["pred_b"]),
    ]
    return jnp.concatenate(rows, axis=0).astype(jnp.float32)


def gru_model_forward(x, params_slab):
    """x: (B, T, in_feat) -> (B, emb_size). `params_slab` is the pre-packed slab (built once)."""
    B, T, F = x.shape
    H = params_slab.shape[1] // 3
    E = 2 * H
    if x.dtype != jnp.float32:
        x = x.astype(jnp.float32)
    # No grid / BlockSpec scaffolding: whole arrays (all tiny) are placed in VMEM.
    # NOTE: at production sizes, add a T-streaming grid axis for x/gi (sized for v7x's
    # 64 MiB VMEM), an optional "parallel" batch axis for v7x's two TensorCores (minding the
    # BatchNorm batch statistics), and bf16 MXU inputs with f32 accumulation.
    return pl.pallas_call(
        gru_forward_kernel,
        out_shape=jax.ShapeDtypeStruct((B, E), jnp.float32),
    )(x, params_slab)


def init_params(key, in_feat, emb_size):
    """Deterministic synthetic init mirroring the module's parameter shapes."""
    H = emb_size // 2
    k_gru = 1.0 / math.sqrt(H)
    k_fc = 1.0 / math.sqrt(emb_size)
    ks = jax.random.split(key, 12)

    def u(k, shape, bound):
        return jax.random.uniform(k, shape, jnp.float32, -bound, bound)

    return dict(
        # GRU forward direction (stored as (in, 3H) / (H, 3H); gate order [r, z, n])
        wih_f=u(ks[0], (in_feat, 3 * H), k_gru),
        whh_f=u(ks[1], (H, 3 * H), k_gru),
        bih_f=u(ks[2], (1, 3 * H), k_gru),
        bhh_f=u(ks[3], (1, 3 * H), k_gru),
        # GRU reverse direction (whh_b kept for the reference; the kernel does not need it)
        wih_b=u(ks[4], (in_feat, 3 * H), k_gru),
        whh_b=u(ks[5], (H, 3 * H), k_gru),
        bih_b=u(ks[6], (1, 3 * H), k_gru),
        bhh_b=u(ks[7], (1, 3 * H), k_gru),
        # fc: Linear(emb, emb)
        fc_w=u(ks[8], (emb_size, emb_size), k_fc),
        fc_b=u(ks[9], (1, emb_size), k_fc),
        # BatchNorm1d(emb): default affine init (weight=1, bias=0)
        bn_g=jnp.ones((1, emb_size), jnp.float32),
        bn_b=jnp.zeros((1, emb_size), jnp.float32),
        # predictor: Linear(emb, emb)
        pred_w=u(ks[10], (emb_size, emb_size), k_fc),
        pred_b=u(ks[11], (1, emb_size), k_fc),
    )


def reference_forward(x, params):
    """Pure-JAX reference matching the intended PyTorch semantics."""
    B, T, _ = x.shape
    H = params["whh_f"].shape[0]

    def cell(xt, h, wih, whh, bih, bhh):
        gi = xt @ wih + bih
        gh = h @ whh + bhh
        r = jax.nn.sigmoid(gi[:, :H] + gh[:, :H])
        z = jax.nn.sigmoid(gi[:, H:2 * H] + gh[:, H:2 * H])
        n = jnp.tanh(gi[:, 2 * H:] + r * gh[:, 2 * H:])
        return (1.0 - z) * n + z * h

    h = jnp.zeros((B, H), jnp.float32)
    for t in range(T):
        h = cell(x[:, t, :], h, params["wih_f"], params["whh_f"],
                 params["bih_f"], params["bhh_f"])
    hb = cell(x[:, T - 1, :], jnp.zeros((B, H), jnp.float32),
              params["wih_b"], params["whh_b"], params["bih_b"], params["bhh_b"])
    feat = jnp.concatenate([h, hb], axis=-1)
    y = feat @ params["fc_w"] + params["fc_b"]
    mean = y.mean(0, keepdims=True)
    var = ((y - mean) ** 2).mean(0, keepdims=True)
    y = (y - mean) / jnp.sqrt(var + 1e-5) * params["bn_g"] + params["bn_b"]
    return y @ params["pred_w"] + params["pred_b"]


if __name__ == "__main__":
    B, T, IN_FEAT, EMB = 2, 8, 16, 32   # hidden_size = EMB // 2 = 16, num_layers = 1

    key = jax.random.PRNGKey(0)
    k_x, k_p = jax.random.split(key)
    x = jax.random.normal(k_x, (B, T, IN_FEAT), jnp.float32)
    params = init_params(k_p, IN_FEAT, EMB)

    # Parameter packing happens ONCE here (not on the per-call path).
    params_slab = jax.block_until_ready(pack_params(params))

    out = gru_model_forward(x, params_slab)
    out = jax.block_until_ready(out)
    assert out.shape == (B, EMB), out.shape

    ref = reference_forward(x, params)
    assert jnp.allclose(out, ref, rtol=1e-3, atol=1e-3), (
        float(jnp.max(jnp.abs(out - ref))))

    print("KERNEL_OK")
</pallas_src>

<mosaic_0001>
module attributes {stable_mosaic.version = 11 : i64} {
  func.func @gru_forward_kernel(%arg0: memref<2x8x16xf32, #tpu.memory_space<vmem>>, %arg1: memref<120x48xf32, #tpu.memory_space<vmem>>, %arg2: memref<2x32xf32, #tpu.memory_space<vmem>>) attributes {dimension_semantics = [], scalar_prefetch = 0 : i64, scratch_operands = 0 : i64, tpu.core_type = #tpu.core_type<tc>} {
    %c0 = arith.constant 0 : index
    %c0_0 = arith.constant 0 : index
    %0 = vector.load %arg1[%c0, %c0_0] : memref<120x48xf32, #tpu.memory_space<vmem>>, vector<120x48xf32>
    %1 = vector.extract_strided_slice %0 {offsets = [0, 0], sizes = [16, 48], strides = [1, 1]} : vector<120x48xf32> to vector<16x48xf32>
    %2 = vector.extract_strided_slice %0 {offsets = [16, 0], sizes = [16, 48], strides = [1, 1]} : vector<120x48xf32> to vector<16x48xf32>
    %3 = vector.extract_strided_slice %0 {offsets = [32, 0], sizes = [16, 48], strides = [1, 1]} : vector<120x48xf32> to vector<16x48xf32>
    %4 = vector.extract_strided_slice %0 {offsets = [48, 0], sizes = [32, 32], strides = [1, 1]} : vector<120x48xf32> to vector<32x32xf32>
    %5 = vector.extract_strided_slice %0 {offsets = [80, 0], sizes = [32, 32], strides = [1, 1]} : vector<120x48xf32> to vector<32x32xf32>
    %6 = vector.extract_strided_slice %0 {offsets = [112, 0], sizes = [1, 48], strides = [1, 1]} : vector<120x48xf32> to vector<1x48xf32>
    %7 = vector.extract_strided_slice %0 {offsets = [113, 0], sizes = [1, 48], strides = [1, 1]} : vector<120x48xf32> to vector<1x48xf32>
    %8 = vector.extract_strided_slice %0 {offsets = [114, 0], sizes = [1, 16], strides = [1, 1]} : vector<120x48xf32> to vector<1x16xf32>
    %9 = vector.extract_strided_slice %0 {offsets = [115, 0], sizes = [1, 16], strides = [1, 1]} : vector<120x48xf32> to vector<1x16xf32>
    %10 = vector.extract_strided_slice %0 {offsets = [116, 0], sizes = [1, 32], strides = [1, 1]} : vector<120x48xf32> to vector<1x32xf32>
    %11 = vector.extract_strided_slice %0 {offsets = [117, 0], sizes = [1, 32], strides = [1, 1]} : vector<120x48xf32> to vector<1x32xf32>
    %12 = vector.extract_strided_slice %0 {offsets = [118, 0], sizes = [1, 32], strides = [1, 1]} : vector<120x48xf32> to vector<1x32xf32>
    %13 = vector.extract_strided_slice %0 {offsets = [119, 0], sizes = [1, 32], strides = [1, 1]} : vector<120x48xf32> to vector<1x32xf32>
    %c0_1 = arith.constant 0 : index
    %c0_2 = arith.constant 0 : index
    %c0_3 = arith.constant 0 : index
    %14 = vector.load %arg0[%c0_1, %c0_2, %c0_3] : memref<2x8x16xf32, #tpu.memory_space<vmem>>, vector<2x8x16xf32>
    %15 = vector.extract_strided_slice %14 {offsets = [0, 0, 0], sizes = [2, 1, 16], strides = [1, 1, 1]} : vector<2x8x16xf32> to vector<2x1x16xf32>
    %16 = vector.shape_cast %15 : vector<2x1x16xf32> to vector<2x16xf32>
    %17 = vector.extract_strided_slice %14 {offsets = [0, 1, 0], sizes = [2, 1, 16], strides = [1, 1, 1]} : vector<2x8x16xf32> to vector<2x1x16xf32>
    %18 = vector.shape_cast %17 : vector<2x1x16xf32> to vector<2x16xf32>
    %19 = vector.extract_strided_slice %14 {offsets = [0, 2, 0], sizes = [2, 1, 16], strides = [1, 1, 1]} : vector<2x8x16xf32> to vector<2x1x16xf32>
    %20 = vector.shape_cast %19 : vector<2x1x16xf32> to vector<2x16xf32>
    %21 = vector.extract_strided_slice %14 {offsets = [0, 3, 0], sizes = [2, 1, 16], strides = [1, 1, 1]} : vector<2x8x16xf32> to vector<2x1x16xf32>
    %22 = vector.shape_cast %21 : vector<2x1x16xf32> to vector<2x16xf32>
    %23 = vector.extract_strided_slice %14 {offsets = [0, 4, 0], sizes = [2, 1, 16], strides = [1, 1, 1]} : vector<2x8x16xf32> to vector<2x1x16xf32>
    %24 = vector.shape_cast %23 : vector<2x1x16xf32> to vector<2x16xf32>
    %25 = vector.extract_strided_slice %14 {offsets = [0, 5, 0], sizes = [2, 1, 16], strides = [1, 1, 1]} : vector<2x8x16xf32> to vector<2x1x16xf32>
    %26 = vector.shape_cast %25 : vector<2x1x16xf32> to vector<2x16xf32>
    %27 = vector.extract_strided_slice %14 {offsets = [0, 6, 0], sizes = [2, 1, 16], strides = [1, 1, 1]} : vector<2x8x16xf32> to vector<2x1x16xf32>
    %28 = vector.shape_cast %27 : vector<2x1x16xf32> to vector<2x16xf32>
    %29 = vector.extract_strided_slice %14 {offsets = [0, 7, 0], sizes = [2, 1, 16], strides = [1, 1, 1]} : vector<2x8x16xf32> to vector<2x1x16xf32>
    %30 = vector.shape_cast %29 : vector<2x1x16xf32> to vector<2x16xf32>
    %31 = tpu.concatenate %16, %18, %20, %22, %24, %26, %28, %30 in 0 : vector<2x16xf32>, vector<2x16xf32>, vector<2x16xf32>, vector<2x16xf32>, vector<2x16xf32>, vector<2x16xf32>, vector<2x16xf32>, vector<2x16xf32> -> vector<16x16xf32>
    %cst = arith.constant dense<0.000000e+00> : vector<16x48xf32>
    %32 = tpu.matmul %31, %1, %cst {dimension_numbers = #tpu.dot_dimension_numbers<[1], [0], [0], [1], [0, 0, 1, 1], [], []>} : vector<16x16xf32>, vector<16x48xf32>, vector<16x48xf32> -> vector<16x48xf32>
    %33 = vector.broadcast %6 : vector<1x48xf32> to vector<16x48xf32>
    %34 = arith.addf %32, %33 : vector<16x48xf32>
    %35 = vector.extract_strided_slice %14 {offsets = [0, 7, 0], sizes = [2, 1, 16], strides = [1, 1, 1]} : vector<2x8x16xf32> to vector<2x1x16xf32>
    %36 = vector.shape_cast %35 : vector<2x1x16xf32> to vector<2x16xf32>
    %cst_4 = arith.constant dense<0.000000e+00> : vector<2x48xf32>
    %37 = tpu.matmul %36, %2, %cst_4 {dimension_numbers = #tpu.dot_dimension_numbers<[1], [0], [0], [1], [0, 0, 1, 1], [], []>} : vector<2x16xf32>, vector<16x48xf32>, vector<2x48xf32> -> vector<2x48xf32>
    %38 = vector.broadcast %7 : vector<1x48xf32> to vector<2x48xf32>
    %39 = arith.addf %37, %38 : vector<2x48xf32>
    %cst_5 = arith.constant 0.000000e+00 : f32
    %40 = vector.broadcast %cst_5 : f32 to vector<2x16xf32>
    %41 = vector.extract_strided_slice %34 {offsets = [0, 0], sizes = [2, 48], strides = [1, 1]} : vector<16x48xf32> to vector<2x48xf32>
    %cst_6 = arith.constant dense<0.000000e+00> : vector<2x48xf32>
    %42 = tpu.matmul %40, %3, %cst_6 {dimension_numbers = #tpu.dot_dimension_numbers<[1], [0], [0], [1], [0, 0, 1, 1], [], []>} : vector<2x16xf32>, vector<16x48xf32>, vector<2x48xf32> -> vector<2x48xf32>
    %43 = vector.extract_strided_slice %41 {offsets = [0, 0], sizes = [2, 16], strides = [1, 1]} : vector<2x48xf32> to vector<2x16xf32>
    %44 = vector.extract_strided_slice %42 {offsets = [0, 0], sizes = [2, 16], strides = [1, 1]} : vector<2x48xf32> to vector<2x16xf32>
    %45 = arith.addf %43, %44 : vector<2x16xf32>
    %46 = arith.negf %45 : vector<2x16xf32>
    %47 = math.exp %46 : vector<2x16xf32>
    %cst_7 = arith.constant 1.000000e+00 : f32
    %48 = vector.broadcast %cst_7 : f32 to vector<2x16xf32>
    %49 = arith.addf %48, %47 : vector<2x16xf32>
    %50 = arith.divf %48, %49 : vector<2x16xf32>
    %51 = vector.extract_strided_slice %41 {offsets = [0, 16], sizes = [2, 16], strides = [1, 1]} : vector<2x48xf32> to vector<2x16xf32>
    %52 = vector.extract_strided_slice %42 {offsets = [0, 16], sizes = [2, 16], strides = [1, 1]} : vector<2x48xf32> to vector<2x16xf32>
    %53 = arith.addf %51, %52 : vector<2x16xf32>
    %54 = arith.negf %53 : vector<2x16xf32>
    %55 = math.exp %54 : vector<2x16xf32>
    %cst_8 = arith.constant 1.000000e+00 : f32
    %56 = vector.broadcast %cst_8 : f32 to vector<2x16xf32>
    %57 = arith.addf %56, %55 : vector<2x16xf32>
    %58 = arith.divf %56, %57 : vector<2x16xf32>
    %59 = vector.extract_strided_slice %41 {offsets = [0, 32], sizes = [2, 16], strides = [1, 1]} : vector<2x48xf32> to vector<2x16xf32>
    %60 = vector.extract_strided_slice %42 {offsets = [0, 32], sizes = [2, 16], strides = [1, 1]} : vector<2x48xf32> to vector<2x16xf32>
    %61 = vector.broadcast %8 : vector<1x16xf32> to vector<2x16xf32>
    %62 = arith.addf %60, %61 : vector<2x16xf32>
    %63 = arith.mulf %50, %62 : vector<2x16xf32>
    %64 = arith.addf %59, %63 : vector<2x16xf32>
    %65 = math.tanh %64 : vector<2x16xf32>
    %cst_9 = arith.constant 1.000000e+00 : f32
    %66 = vector.broadcast %cst_9 : f32 to vector<2x16xf32>
    %67 = arith.subf %66, %58 : vector<2x16xf32>
    %68 = arith.mulf %67, %65 : vector<2x16xf32>
    %69 = arith.mulf %58, %40 : vector<2x16xf32>
    %70 = arith.addf %68, %69 : vector<2x16xf32>
    %71 = vector.extract_strided_slice %34 {offsets = [2, 0], sizes = [2, 48], strides = [1, 1]} : vector<16x48xf32> to vector<2x48xf32>
    %cst_10 = arith.constant dense<0.000000e+00> : vector<2x48xf32>
    %72 = tpu.matmul %70, %3, %cst_10 {dimension_numbers = #tpu.dot_dimension_numbers<[1], [0], [0], [1], [0, 0, 1, 1], [], []>} : vector<2x16xf32>, vector<16x48xf32>, vector<2x48xf32> -> vector<2x48xf32>
    %73 = vector.extract_strided_slice %71 {offsets = [0, 0], sizes = [2, 16], strides = [1, 1]} : vector<2x48xf32> to vector<2x16xf32>
    %74 = vector.extract_strided_slice %72 {offsets = [0, 0], sizes = [2, 16], strides = [1, 1]} : vector<2x48xf32> to vector<2x16xf32>
    %75 = arith.addf %73, %74 : vector<2x16xf32>
    %76 = arith.negf %75 : vector<2x16xf32>
    %77 = math.exp %76 : vector<2x16xf32>
    %cst_11 = arith.constant 1.000000e+00 : f32
    %78 = vector.broadcast %cst_11 : f32 to vector<2x16xf32>
    %79 = arith.addf %78, %77 : vector<2x16xf32>
    %80 = arith.divf %78, %79 : vector<2x16xf32>
    %81 = vector.extract_strided_slice %71 {offsets = [0, 16], sizes = [2, 16], strides = [1, 1]} : vector<2x48xf32> to vector<2x16xf32>
    %82 = vector.extract_strided_slice %72 {offsets = [0, 16], sizes = [2, 16], strides = [1, 1]} : vector<2x48xf32> to vector<2x16xf32>
    %83 = arith.addf %81, %82 : vector<2x16xf32>
    %84 = arith.negf %83 : vector<2x16xf32>
    %85 = math.exp %84 : vector<2x16xf32>
    %cst_12 = arith.constant 1.000000e+00 : f32
    %86 = vector.broadcast %cst_12 : f32 to vector<2x16xf32>
    %87 = arith.addf %86, %85 : vector<2x16xf32>
    %88 = arith.divf %86, %87 : vector<2x16xf32>
    %89 = vector.extract_strided_slice %71 {offsets = [0, 32], sizes = [2, 16], strides = [1, 1]} : vector<2x48xf32> to vector<2x16xf32>
    %90 = vector.extract_strided_slice %72 {offsets = [0, 32], sizes = [2, 16], strides = [1, 1]} : vector<2x48xf32> to vector<2x16xf32>
    %91 = vector.broadcast %8 : vector<1x16xf32> to vector<2x16xf32>
    %92 = arith.addf %90, %91 : vector<2x16xf32>
    %93 = arith.mulf %80, %92 : vector<2x16xf32>
    %94 = arith.addf %89, %93 : vector<2x16xf32>
    %95 = math.tanh %94 : vector<2x16xf32>
    %cst_13 = arith.constant 1.000000e+00 : f32
    %96 = vector.broadcast %cst_13 : f32 to vector<2x16xf32>
    %97 = arith.subf %96, %88 : vector<2x16xf32>
    %98 = arith.mulf %97, %95 : vector<2x16xf32>
    %99 = arith.mulf %88, %70 : vector<2x16xf32>
    %100 = arith.addf %98, %99 : vector<2x16xf32>
    %101 = vector.extract_strided_slice %34 {offsets = [4, 0], sizes = [2, 48], strides = [1, 1]} : vector<16x48xf32> to vector<2x48xf32>
    %cst_14 = arith.constant dense<0.000000e+00> : vector<2x48xf32>
    %102 = tpu.matmul %100, %3, %cst_14 {dimension_numbers = #tpu.dot_dimension_numbers<[1], [0], [0], [1], [0, 0, 1, 1], [], []>} : vector<2x16xf32>, vector<16x48xf32>, vector<2x48xf32> -> vector<2x48xf32>
    %103 = vector.extract_strided_slice %101 {offsets = [0, 0], sizes = [2, 16], strides = [1, 1]} : vector<2x48xf32> to vector<2x16xf32>
    %104 = vector.extract_strided_slice %102 {offsets = [0, 0], sizes = [2, 16], strides = [1, 1]} : vector<2x48xf32> to vector<2x16xf32>
    %105 = arith.addf %103, %104 : vector<2x16xf32>
    %106 = arith.negf %105 : vector<2x16xf32>
    %107 = math.exp %106 : vector<2x16xf32>
    %cst_15 = arith.constant 1.000000e+00 : f32
    %108 = vector.broadcast %cst_15 : f32 to vector<2x16xf32>
    %109 = arith.addf %108, %107 : vector<2x16xf32>
    %110 = arith.divf %108, %109 : vector<2x16xf32>
    %111 = vector.extract_strided_slice %101 {offsets = [0, 16], sizes = [2, 16], strides = [1, 1]} : vector<2x48xf32> to vector<2x16xf32>
    %112 = vector.extract_strided_slice %102 {offsets = [0, 16], sizes = [2, 16], strides = [1, 1]} : vector<2x48xf32> to vector<2x16xf32>
    %113 = arith.addf %111, %112 : vector<2x16xf32>
    %114 = arith.negf %113 : vector<2x16xf32>
    %115 = math.exp %114 : vector<2x16xf32>
    %cst_16 = arith.constant 1.000000e+00 : f32
    %116 = vector.broadcast %cst_16 : f32 to vector<2x16xf32>
    %117 = arith.addf %116, %115 : vector<2x16xf32>
    %118 = arith.divf %116, %117 : vector<2x16xf32>
    %119 = vector.extract_strided_slice %101 {offsets = [0, 32], sizes = [2, 16], strides = [1, 1]} : vector<2x48xf32> to vector<2x16xf32>
    %120 = vector.extract_strided_slice %102 {offsets = [0, 32], sizes = [2, 16], strides = [1, 1]} : vector<2x48xf32> to vector<2x16xf32>
    %121 = vector.broadcast %8 : vector<1x16xf32> to vector<2x16xf32>
    %122 = arith.addf %120, %121 : vector<2x16xf32>
    %123 = arith.mulf %110, %122 : vector<2x16xf32>
    %124 = arith.addf %119, %123 : vector<2x16xf32>
    %125 = math.tanh %124 : vector<2x16xf32>
    %cst_17 = arith.constant 1.000000e+00 : f32
    %126 = vector.broadcast %cst_17 : f32 to vector<2x16xf32>
    %127 = arith.subf %126, %118 : vector<2x16xf32>
    %128 = arith.mulf %127, %125 : vector<2x16xf32>
    %129 = arith.mulf %118, %100 : vector<2x16xf32>
    %130 = arith.addf %128, %129 : vector<2x16xf32>
    %131 = vector.extract_strided_slice %34 {offsets = [6, 0], sizes = [2, 48], strides = [1, 1]} : vector<16x48xf32> to vector<2x48xf32>
    %cst_18 = arith.constant dense<0.000000e+00> : vector<2x48xf32>
    %132 = tpu.matmul %130, %3, %cst_18 {dimension_numbers = #tpu.dot_dimension_numbers<[1], [0], [0], [1], [0, 0, 1, 1], [], []>} : vector<2x16xf32>, vector<16x48xf32>, vector<2x48xf32> -> vector<2x48xf32>
    %133 = vector.extract_strided_slice %131 {offsets = [0, 0], sizes = [2, 16], strides = [1, 1]} : vector<2x48xf32> to vector<2x16xf32>
    %134 = vector.extract_strided_slice %132 {offsets = [0, 0], sizes = [2, 16], strides = [1, 1]} : vector<2x48xf32> to vector<2x16xf32>
    %135 = arith.addf %133, %134 : vector<2x16xf32>
    %136 = arith.negf %135 : vector<2x16xf32>
    %137 = math.exp %136 : vector<2x16xf32>
    %cst_19 = arith.constant 1.000000e+00 : f32
    %138 = vector.broadcast %cst_19 : f32 to vector<2x16xf32>
    %139 = arith.addf %138, %137 : vector<2x16xf32>
    %140 = arith.divf %138, %139 : vector<2x16xf32>
    %141 = vector.extract_strided_slice %131 {offsets = [0, 16], sizes = [2, 16], strides = [1, 1]} : vector<2x48xf32> to vector<2x16xf32>
    %142 = vector.extract_strided_slice %132 {offsets = [0, 16], sizes = [2, 16], strides = [1, 1]} : vector<2x48xf32> to vector<2x16xf32>
    %143 = arith.addf %141, %142 : vector<2x16xf32>
    %144 = arith.negf %143 : vector<2x16xf32>
    %145 = math.exp %144 : vector<2x16xf32>
    %cst_20 = arith.constant 1.000000e+00 : f32
    %146 = vector.broadcast %cst_20 : f32 to vector<2x16xf32>
    %147 = arith.addf %146, %145 : vector<2x16xf32>
    %148 = arith.divf %146, %147 : vector<2x16xf32>
    %149 = vector.extract_strided_slice %131 {offsets = [0, 32], sizes = [2, 16], strides = [1, 1]} : vector<2x48xf32> to vector<2x16xf32>
    %150 = vector.extract_strided_slice %132 {offsets = [0, 32], sizes = [2, 16], strides = [1, 1]} : vector<2x48xf32> to vector<2x16xf32>
    %151 = vector.broadcast %8 : vector<1x16xf32> to vector<2x16xf32>
    %152 = arith.addf %150, %151 : vector<2x16xf32>
    %153 = arith.mulf %140, %152 : vector<2x16xf32>
    %154 = arith.addf %149, %153 : vector<2x16xf32>
    %155 = math.tanh %154 : vector<2x16xf32>
    %cst_21 = arith.constant 1.000000e+00 : f32
    %156 = vector.broadcast %cst_21 : f32 to vector<2x16xf32>
    %157 = arith.subf %156, %148 : vector<2x16xf32>
    %158 = arith.mulf %157, %155 : vector<2x16xf32>
    %159 = arith.mulf %148, %130 : vector<2x16xf32>
    %160 = arith.addf %158, %159 : vector<2x16xf32>
    %161 = vector.extract_strided_slice %34 {offsets = [8, 0], sizes = [2, 48], strides = [1, 1]} : vector<16x48xf32> to vector<2x48xf32>
    %cst_22 = arith.constant dense<0.000000e+00> : vector<2x48xf32>
    %162 = tpu.matmul %160, %3, %cst_22 {dimension_numbers = #tpu.dot_dimension_numbers<[1], [0], [0], [1], [0, 0, 1, 1], [], []>} : vector<2x16xf32>, vector<16x48xf32>, vector<2x48xf32> -> vector<2x48xf32>
    %163 = vector.extract_strided_slice %161 {offsets = [0, 0], sizes = [2, 16], strides = [1, 1]} : vector<2x48xf32> to vector<2x16xf32>
    %164 = vector.extract_strided_slice %162 {offsets = [0, 0], sizes = [2, 16], strides = [1, 1]} : vector<2x48xf32> to vector<2x16xf32>
    %165 = arith.addf %163, %164 : vector<2x16xf32>
    %166 = arith.negf %165 : vector<2x16xf32>
    %167 = math.exp %166 : vector<2x16xf32>
    %cst_23 = arith.constant 1.000000e+00 : f32
    %168 = vector.broadcast %cst_23 : f32 to vector<2x16xf32>
    %169 = arith.addf %168, %167 : vector<2x16xf32>
    %170 = arith.divf %168, %169 : vector<2x16xf32>
    %171 = vector.extract_strided_slice %161 {offsets = [0, 16], sizes = [2, 16], strides = [1, 1]} : vector<2x48xf32> to vector<2x16xf32>
    %172 = vector.extract_strided_slice %162 {offsets = [0, 16], sizes = [2, 16], strides = [1, 1]} : vector<2x48xf32> to vector<2x16xf32>
    %173 = arith.addf %171, %172 : vector<2x16xf32>
    %174 = arith.negf %173 : vector<2x16xf32>
    %175 = math.exp %174 : vector<2x16xf32>
    %cst_24 = arith.constant 1.000000e+00 : f32
    %176 = vector.broadcast %cst_24 : f32 to vector<2x16xf32>
    %177 = arith.addf %176, %175 : vector<2x16xf32>
    %178 = arith.divf %176, %177 : vector<2x16xf32>
    %179 = vector.extract_strided_slice %161 {offsets = [0, 32], sizes = [2, 16], strides = [1, 1]} : vector<2x48xf32> to vector<2x16xf32>
    %180 = vector.extract_strided_slice %162 {offsets = [0, 32], sizes = [2, 16], strides = [1, 1]} : vector<2x48xf32> to vector<2x16xf32>
    %181 = vector.broadcast %8 : vector<1x16xf32> to vector<2x16xf32>
    %182 = arith.addf %180, %181 : vector<2x16xf32>
    %183 = arith.mulf %170, %182 : vector<2x16xf32>
    %184 = arith.addf %179, %183 : vector<2x16xf32>
    %185 = math.tanh %184 : vector<2x16xf32>
    %cst_25 = arith.constant 1.000000e+00 : f32
    %186 = vector.broadcast %cst_25 : f32 to vector<2x16xf32>
    %187 = arith.subf %186, %178 : vector<2x16xf32>
    %188 = arith.mulf %187, %185 : vector<2x16xf32>
    %189 = arith.mulf %178, %160 : vector<2x16xf32>
    %190 = arith.addf %188, %189 : vector<2x16xf32>
    %191 = vector.extract_strided_slice %34 {offsets = [10, 0], sizes = [2, 48], strides = [1, 1]} : vector<16x48xf32> to vector<2x48xf32>
    %cst_26 = arith.constant dense<0.000000e+00> : vector<2x48xf32>
    %192 = tpu.matmul %190, %3, %cst_26 {dimension_numbers = #tpu.dot_dimension_numbers<[1], [0], [0], [1], [0, 0, 1, 1], [], []>} : vector<2x16xf32>, vector<16x48xf32>, vector<2x48xf32> -> vector<2x48xf32>
    %193 = vector.extract_strided_slice %191 {offsets = [0, 0], sizes = [2, 16], strides = [1, 1]} : vector<2x48xf32> to vector<2x16xf32>
    %194 = vector.extract_strided_slice %192 {offsets = [0, 0], sizes = [2, 16], strides = [1, 1]} : vector<2x48xf32> to vector<2x16xf32>
    %195 = arith.addf %193, %194 : vector<2x16xf32>
    %196 = arith.negf %195 : vector<2x16xf32>
    %197 = math.exp %196 : vector<2x16xf32>
    %cst_27 = arith.constant 1.000000e+00 : f32
    %198 = vector.broadcast %cst_27 : f32 to vector<2x16xf32>
    %199 = arith.addf %198, %197 : vector<2x16xf32>
    %200 = arith.divf %198, %199 : vector<2x16xf32>
    %201 = vector.extract_strided_slice %191 {offsets = [0, 16], sizes = [2, 16], strides = [1, 1]} : vector<2x48xf32> to vector<2x16xf32>
    %202 = vector.extract_strided_slice %192 {offsets = [0, 16], sizes = [2, 16], strides = [1, 1]} : vector<2x48xf32> to vector<2x16xf32>
    %203 = arith.addf %201, %202 : vector<2x16xf32>
    %204 = arith.negf %203 : vector<2x16xf32>
    %205 = math.exp %204 : vector<2x16xf32>
    %cst_28 = arith.constant 1.000000e+00 : f32
    %206 = vector.broadcast %cst_28 : f32 to vector<2x16xf32>
    %207 = arith.addf %206, %205 : vector<2x16xf32>
    %208 = arith.divf %206, %207 : vector<2x16xf32>
    %209 = vector.extract_strided_slice %191 {offsets = [0, 32], sizes = [2, 16], strides = [1, 1]} : vector<2x48xf32> to vector<2x16xf32>
    %210 = vector.extract_strided_slice %192 {offsets = [0, 32], sizes = [2, 16], strides = [1, 1]} : vector<2x48xf32> to vector<2x16xf32>
    %211 = vector.broadcast %8 : vector<1x16xf32> to vector<2x16xf32>
    %212 = arith.addf %210, %211 : vector<2x16xf32>
    %213 = arith.mulf %200, %212 : vector<2x16xf32>
    %214 = arith.addf %209, %213 : vector<2x16xf32>
    %215 = math.tanh %214 : vector<2x16xf32>
    %cst_29 = arith.constant 1.000000e+00 : f32
    %216 = vector.broadcast %cst_29 : f32 to vector<2x16xf32>
    %217 = arith.subf %216, %208 : vector<2x16xf32>
    %218 = arith.mulf %217, %215 : vector<2x16xf32>
    %219 = arith.mulf %208, %190 : vector<2x16xf32>
    %220 = arith.addf %218, %219 : vector<2x16xf32>
    %221 = vector.extract_strided_slice %34 {offsets = [12, 0], sizes = [2, 48], strides = [1, 1]} : vector<16x48xf32> to vector<2x48xf32>
    %cst_30 = arith.constant dense<0.000000e+00> : vector<2x48xf32>
    %222 = tpu.matmul %220, %3, %cst_30 {dimension_numbers = #tpu.dot_dimension_numbers<[1], [0], [0], [1], [0, 0, 1, 1], [], []>} : vector<2x16xf32>, vector<16x48xf32>, vector<2x48xf32> -> vector<2x48xf32>
    %223 = vector.extract_strided_slice %221 {offsets = [0, 0], sizes = [2, 16], strides = [1, 1]} : vector<2x48xf32> to vector<2x16xf32>
    %224 = vector.extract_strided_slice %222 {offsets = [0, 0], sizes = [2, 16], strides = [1, 1]} : vector<2x48xf32> to vector<2x16xf32>
    %225 = arith.addf %223, %224 : vector<2x16xf32>
    %226 = arith.negf %225 : vector<2x16xf32>
    %227 = math.exp %226 : vector<2x16xf32>
    %cst_31 = arith.constant 1.000000e+00 : f32
    %228 = vector.broadcast %cst_31 : f32 to vector<2x16xf32>
    %229 = arith.addf %228, %227 : vector<2x16xf32>
    %230 = arith.divf %228, %229 : vector<2x16xf32>
    %231 = vector.extract_strided_slice %221 {offsets = [0, 16], sizes = [2, 16], strides = [1, 1]} : vector<2x48xf32> to vector<2x16xf32>
    %232 = vector.extract_strided_slice %222 {offsets = [0, 16], sizes = [2, 16], strides = [1, 1]} : vector<2x48xf32> to vector<2x16xf32>
    %233 = arith.addf %231, %232 : vector<2x16xf32>
    %234 = arith.negf %233 : vector<2x16xf32>
    %235 = math.exp %234 : vector<2x16xf32>
    %cst_32 = arith.constant 1.000000e+00 : f32
    %236 = vector.broadcast %cst_32 : f32 to vector<2x16xf32>
    %237 = arith.addf %236, %235 : vector<2x16xf32>
    %238 = arith.divf %236, %237 : vector<2x16xf32>
    %239 = vector.extract_strided_slice %221 {offsets = [0, 32], sizes = [2, 16], strides = [1, 1]} : vector<2x48xf32> to vector<2x16xf32>
    %240 = vector.extract_strided_slice %222 {offsets = [0, 32], sizes = [2, 16], strides = [1, 1]} : vector<2x48xf32> to vector<2x16xf32>
    %241 = vector.broadcast %8 : vector<1x16xf32> to vector<2x16xf32>
    %242 = arith.addf %240, %241 : vector<2x16xf32>
    %243 = arith.mulf %230, %242 : vector<2x16xf32>
    %244 = arith.addf %239, %243 : vector<2x16xf32>
    %245 = math.tanh %244 : vector<2x16xf32>
    %cst_33 = arith.constant 1.000000e+00 : f32
    %246 = vector.broadcast %cst_33 : f32 to vector<2x16xf32>
    %247 = arith.subf %246, %238 : vector<2x16xf32>
    %248 = arith.mulf %247, %245 : vector<2x16xf32>
    %249 = arith.mulf %238, %220 : vector<2x16xf32>
    %250 = arith.addf %248, %249 : vector<2x16xf32>
    %251 = vector.extract_strided_slice %34 {offsets = [14, 0], sizes = [2, 48], strides = [1, 1]} : vector<16x48xf32> to vector<2x48xf32>
    %cst_34 = arith.constant dense<0.000000e+00> : vector<2x48xf32>
    %252 = tpu.matmul %250, %3, %cst_34 {dimension_numbers = #tpu.dot_dimension_numbers<[1], [0], [0], [1], [0, 0, 1, 1], [], []>} : vector<2x16xf32>, vector<16x48xf32>, vector<2x48xf32> -> vector<2x48xf32>
    %253 = vector.extract_strided_slice %251 {offsets = [0, 0], sizes = [2, 16], strides = [1, 1]} : vector<2x48xf32> to vector<2x16xf32>
    %254 = vector.extract_strided_slice %252 {offsets = [0, 0], sizes = [2, 16], strides = [1, 1]} : vector<2x48xf32> to vector<2x16xf32>
    %255 = arith.addf %253, %254 : vector<2x16xf32>
    %256 = arith.negf %255 : vector<2x16xf32>
    %257 = math.exp %256 : vector<2x16xf32>
    %cst_35 = arith.constant 1.000000e+00 : f32
    %258 = vector.broadcast %cst_35 : f32 to vector<2x16xf32>
    %259 = arith.addf %258, %257 : vector<2x16xf32>
    %260 = arith.divf %258, %259 : vector<2x16xf32>
    %261 = vector.extract_strided_slice %251 {offsets = [0, 16], sizes = [2, 16], strides = [1, 1]} : vector<2x48xf32> to vector<2x16xf32>
    %262 = vector.extract_strided_slice %252 {offsets = [0, 16], sizes = [2, 16], strides = [1, 1]} : vector<2x48xf32> to vector<2x16xf32>
    %263 = arith.addf %261, %262 : vector<2x16xf32>
    %264 = arith.negf %263 : vector<2x16xf32>
    %265 = math.exp %264 : vector<2x16xf32>
    %cst_36 = arith.constant 1.000000e+00 : f32
    %266 = vector.broadcast %cst_36 : f32 to vector<2x16xf32>
    %267 = arith.addf %266, %265 : vector<2x16xf32>
    %268 = arith.divf %266, %267 : vector<2x16xf32>
    %269 = vector.extract_strided_slice %251 {offsets = [0, 32], sizes = [2, 16], strides = [1, 1]} : vector<2x48xf32> to vector<2x16xf32>
    %270 = vector.extract_strided_slice %252 {offsets = [0, 32], sizes = [2, 16], strides = [1, 1]} : vector<2x48xf32> to vector<2x16xf32>
    %271 = vector.broadcast %8 : vector<1x16xf32> to vector<2x16xf32>
    %272 = arith.addf %270, %271 : vector<2x16xf32>
    %273 = arith.mulf %260, %272 : vector<2x16xf32>
    %274 = arith.addf %269, %273 : vector<2x16xf32>
    %275 = math.tanh %274 : vector<2x16xf32>
    %cst_37 = arith.constant 1.000000e+00 : f32
    %276 = vector.broadcast %cst_37 : f32 to vector<2x16xf32>
    %277 = arith.subf %276, %268 : vector<2x16xf32>
    %278 = arith.mulf %277, %275 : vector<2x16xf32>
    %279 = arith.mulf %268, %250 : vector<2x16xf32>
    %280 = arith.addf %278, %279 : vector<2x16xf32>
    %281 = vector.extract_strided_slice %39 {offsets = [0, 0], sizes = [2, 16], strides = [1, 1]} : vector<2x48xf32> to vector<2x16xf32>
    %282 = arith.negf %281 : vector<2x16xf32>
    %283 = math.exp %282 : vector<2x16xf32>
    %cst_38 = arith.constant 1.000000e+00 : f32
    %284 = vector.broadcast %cst_38 : f32 to vector<2x16xf32>
    %285 = arith.addf %284, %283 : vector<2x16xf32>
    %286 = arith.divf %284, %285 : vector<2x16xf32>
    %287 = vector.extract_strided_slice %39 {offsets = [0, 16], sizes = [2, 16], strides = [1, 1]} : vector<2x48xf32> to vector<2x16xf32>
    %288 = arith.negf %287 : vector<2x16xf32>
    %289 = math.exp %288 : vector<2x16xf32>
    %cst_39 = arith.constant 1.000000e+00 : f32
    %290 = vector.broadcast %cst_39 : f32 to vector<2x16xf32>
    %291 = arith.addf %290, %289 : vector<2x16xf32>
    %292 = arith.divf %290, %291 : vector<2x16xf32>
    %293 = vector.extract_strided_slice %39 {offsets = [0, 32], sizes = [2, 16], strides = [1, 1]} : vector<2x48xf32> to vector<2x16xf32>
    %294 = vector.broadcast %9 : vector<1x16xf32> to vector<2x16xf32>
    %295 = arith.mulf %286, %294 : vector<2x16xf32>
    %296 = arith.addf %293, %295 : vector<2x16xf32>
    %297 = math.tanh %296 : vector<2x16xf32>
    %cst_40 = arith.constant 1.000000e+00 : f32
    %298 = vector.broadcast %cst_40 : f32 to vector<2x16xf32>
    %299 = arith.subf %298, %292 : vector<2x16xf32>
    %300 = arith.mulf %299, %297 : vector<2x16xf32>
    %301 = vector.extract_strided_slice %4 {offsets = [0, 0], sizes = [16, 32], strides = [1, 1]} : vector<32x32xf32> to vector<16x32xf32>
    %cst_41 = arith.constant dense<0.000000e+00> : vector<2x32xf32>
    %302 = tpu.matmul %280, %301, %cst_41 {dimension_numbers = #tpu.dot_dimension_numbers<[1], [0], [0], [1], [0, 0, 1, 1], [], []>} : vector<2x16xf32>, vector<16x32xf32>, vector<2x32xf32> -> vector<2x32xf32>
    %303 = vector.extract_strided_slice %4 {offsets = [16, 0], sizes = [16, 32], strides = [1, 1]} : vector<32x32xf32> to vector<16x32xf32>
    %cst_42 = arith.constant dense<0.000000e+00> : vector<2x32xf32>
    %304 = tpu.matmul %300, %303, %cst_42 {dimension_numbers = #tpu.dot_dimension_numbers<[1], [0], [0], [1], [0, 0, 1, 1], [], []>} : vector<2x16xf32>, vector<16x32xf32>, vector<2x32xf32> -> vector<2x32xf32>
    %305 = arith.addf %302, %304 : vector<2x32xf32>
    %306 = vector.broadcast %10 : vector<1x32xf32> to vector<2x32xf32>
    %307 = arith.addf %305, %306 : vector<2x32xf32>
    %cst_43 = arith.constant dense<0.000000e+00> : vector<32xf32>
    %308 = vector.multi_reduction <add>, %307, %cst_43 [0] : vector<2x32xf32> to vector<32xf32>
    %309 = vector.shape_cast %308 : vector<32xf32> to vector<1x32xf32>
    %cst_44 = arith.constant 2.000000e+00 : f32
    %310 = vector.broadcast %cst_44 : f32 to vector<1x32xf32>
    %311 = arith.divf %309, %310 : vector<1x32xf32>
    %312 = vector.broadcast %311 : vector<1x32xf32> to vector<2x32xf32>
    %313 = arith.subf %307, %312 : vector<2x32xf32>
    %314 = arith.mulf %313, %313 : vector<2x32xf32>
    %cst_45 = arith.constant dense<0.000000e+00> : vector<32xf32>
    %315 = vector.multi_reduction <add>, %314, %cst_45 [0] : vector<2x32xf32> to vector<32xf32>
    %316 = vector.shape_cast %315 : vector<32xf32> to vector<1x32xf32>
    %cst_46 = arith.constant 2.000000e+00 : f32
    %317 = vector.broadcast %cst_46 : f32 to vector<1x32xf32>
    %318 = arith.divf %316, %317 : vector<1x32xf32>
    %319 = vector.broadcast %311 : vector<1x32xf32> to vector<2x32xf32>
    %320 = arith.subf %307, %319 : vector<2x32xf32>
    %cst_47 = arith.constant 9.99999974E-6 : f32
    %321 = vector.broadcast %cst_47 : f32 to vector<1x32xf32>
    %322 = arith.addf %318, %321 : vector<1x32xf32>
    %323 = math.rsqrt %322 : vector<1x32xf32>
    %324 = vector.broadcast %323 : vector<1x32xf32> to vector<2x32xf32>
    %325 = arith.mulf %320, %324 : vector<2x32xf32>
    %326 = vector.broadcast %11 : vector<1x32xf32> to vector<2x32xf32>
    %327 = arith.mulf %325, %326 : vector<2x32xf32>
    %328 = vector.broadcast %12 : vector<1x32xf32> to vector<2x32xf32>
    %329 = arith.addf %327, %328 : vector<2x32xf32>
    %cst_48 = arith.constant dense<0.000000e+00> : vector<2x32xf32>
    %330 = tpu.matmul %329, %5, %cst_48 {dimension_numbers = #tpu.dot_dimension_numbers<[1], [0], [0], [1], [0, 0, 1, 1], [], []>} : vector<2x32xf32>, vector<32x32xf32>, vector<2x32xf32> -> vector<2x32xf32>
    %331 = vector.broadcast %13 : vector<1x32xf32> to vector<2x32xf32>
    %332 = arith.addf %330, %331 : vector<2x32xf32>
    %c0_49 = arith.constant 0 : index
    %c0_50 = arith.constant 0 : index
    %333 = vector.load %arg2[%c0_49, %c0_50] : memref<2x32xf32, #tpu.memory_space<vmem>>, vector<2x32xf32>
    tpu.vector_store %arg2[%c0_49, %c0_50], %332 {strides = array<i32>} : memref<2x32xf32, #tpu.memory_space<vmem>>, vector<2x32xf32>,
    return
  }
}

</mosaic_0001>

<llo_original>
// kernel: tpu_custom_call.1
$region0: #{tpu_custom_call.1}
  #allocation0 [shape = 'u32[]', space=smem, size = 0x4, offset = 0x4, fixed_abs, tag = 'smem constant byte address 0x4 - core index']
  #allocation1 [shape = 'u32[72,128]{1,0:T(1,128)}', space=vmem, size = 0x9000, scoped, tag = 'internal scratch']
  %s0 = inlined_call_operand.vmem [shape: f32[2,8,16], index: 0, kind: input, shape index: {}]
  %s1 = inlined_call_operand.vmem [shape: f32[120,48], index: 1, kind: input, shape index: {}]
  %s2 = inlined_call_operand.hbm [shape: f32[2,32], index: 2, kind: output, shape index: {}]
  %s3 = sld [smem:[#allocation0]]
  $region18: #{tpu_custom_call.1} parent=0
    _
  %s5 = ssub.s32 1, %s3
  %s6 = scalar_select 0, %s5, %s3
  $region1: #{tpu_custom_call.1} parent=0
    #allocation2 [shape = 'u8[1024]{0}', space=vmem, size = 0x400, scoped, tag = 'output window, operand 0, single buffered']
    #allocation3 [shape = 's32[1]{0}', space=sflag, size = 0x4, scoped, tag = 'scoped memory for tpu_custom_call.1']
    %7 = vsyncpa [#allocation3], 0
    // Predicated region
    $region2: #{tpu_custom_call.1} parent=1 // pred_check
      _
    $region3: #{tpu_custom_call.1} parent=1 // pred_check_branch
      %9 = sbr.rel (0) target = $region5
    $region4: #{tpu_custom_call.1} parent=1 // pred_region
      _
    $region5: #{tpu_custom_call.1} parent=1 // pred_fallthru
      _
    // Predicated region
    $region6: #{tpu_custom_call.1} parent=1 // pred_check
      _
    $region7: #{tpu_custom_call.1} parent=1 // pred_check_branch
      %11 = sbr.rel (0) target = $region9
    $region8: #{tpu_custom_call.1} parent=1 // pred_region
      _
    $region9: #{tpu_custom_call.1} parent=1 // pred_fallthru
      _
    %v12 = vld [vmem:[%s1] sm:$0xff]
    %v13 = vld [vmem:[%s1 + $0x8] sm:$0xff]
    %v14 = vld [vmem:[%s1 + $0x10] sm:$0xff]
    %v15 = vld [vmem:[%s1 + $0x18] sm:$0xff]
    %v16 = vld [vmem:[%s1 + $0x20] sm:$0xff]
    %v17 = vld [vmem:[%s1 + $0x28] sm:$0xff]
    %v18 = vld [vmem:[%s1 + $0x30] sm:$0xff]
    %v19 = vld [vmem:[%s1 + $0x38] sm:$0xff]
    %v20 = vld [vmem:[%s1 + $0x40] sm:$0xff]
    %v21 = vld [vmem:[%s1 + $0x48] sm:$0xff]
    %v22 = vld [vmem:[%s1 + $0x50] sm:$0xff]
    %v23 = vld [vmem:[%s1 + $0x58] sm:$0xff]
    %v24 = vld [vmem:[%s1 + $0x60] sm:$0xff]
    %v25 = vld [vmem:[%s1 + $0x68] sm:$0xff]
    %v26 = vld [vmem:[%s1 + $0x70] sm:$0xff]
    %v27 = vld [vmem:[%s0] sm:$0xff]
    %v28 = vld [vmem:[%s0 + $0x8] sm:$0xff]
    %v31 = vrot.slane %v28, 7
    %vm32 = vcmask 1041409
    %v33 = vsel %vm32, %v31, %v27
    %v35 = vrot.slane %v27, 7
    %v36 = vrot.slane %v28, 6
    %vm37 = vcmask 1043459
    %v38 = vsel %vm37, %v36, %v35
    %v40 = vrot.slane %v27, 6
    %v41 = vrot.slane %v28, 5
    %vm42 = vcmask 1045509
    %v43 = vsel %vm42, %v41, %v40
    %v45 = vrot.slane %v27, 5
    %v46 = vrot.slane %v28, 4
    %vm47 = vcmask 1047559
    %v48 = vsel %vm47, %v46, %v45
    %v50 = vrot.slane %v27, 4
    %v51 = vrot.slane %v28, 3
    %v52 = vsel %vm32, %v51, %v50
    %v54 = vrot.slane %v27, 3
    %v55 = vrot.slane %v28, 2
    %v56 = vsel %vm37, %v55, %v54
    %v58 = vrot.slane %v27, 2
    %v59 = vrot.slane %v28, 1
    %v60 = vsel %vm42, %v59, %v58
    %v62 = vrot.slane %v27, 1
    %v63 = vsel %vm47, %v28, %v62
    %vm65 = vcmask 1041408
    %v66 = vsel %vm65, %v33, %v38
    %vm67 = vcmask 1043456
    %v68 = vsel %vm67, %v66, %v43
    %vm69 = vcmask 1045504
    %v70 = vsel %vm69, %v68, %v48
    %v71 = vsel %vm65, %v52, %v56
    %v72 = vsel %vm67, %v71, %v60
    %v73 = vsel %vm69, %v72, %v63
    %v74 = vperm.slane %v26, 0
    %vm75 = vcmask 130048
    %v77 = vsel %vm75, %v70, 0
    %v80 = vsel %vm75, %v73, 0
    %82 = vmatpush.msra.mxu0 0.0
    %83 = vmatpush.msra.mxu0 0.0
    %84 = vmatpush.msra.mxu0 0.0
    %85 = vmatpush.msra.mxu0 0.0
    %86 = vmatpush.msra.mxu0 0.0
    %87 = vmatpush.msra.mxu0 0.0
    %88 = vmatpush.msra.mxu0 0.0
    %89 = vmatpush.msra.mxu0 0.0
    %90 = vmatpush.msra.mxu0 0.0
    %91 = vmatpush.msra.mxu0 0.0
    %92 = vmatpush.msra.mxu0 0.0
    %93 = vmatpush.msra.mxu0 0.0
    %94 = vmatpush.msra.mxu0 0.0
    %95 = vmatpush.msra.mxu0 0.0
    %96 = vmatpush.msra.mxu0 %v13
    %97 = vmatpush.msra.mxu0 %v12
    %98 = vmatmul.f32.gmra.mxu0 %v77
    %v99 = vpop.f32.mrf.mxu0
    %v100 = vadd.f32 %v74, %v99
    %101 = vmatmul.f32.gmra.mxu0 %v80
    %v102 = vpop.f32.mrf.mxu0
    %v103 = vadd.f32 %v74, %v102
    %104 = vdwg.mxu0
    %v105 = vperm.slane %v26, 1
    %v106 = vsel %vm32, %v36, %v35
    %v107 = vsel %vm75, %v106, 0
    %109 = vmatpush.msra.mxu0 0.0
    %110 = vmatpush.msra.mxu0 0.0
    %111 = vmatpush.msra.mxu0 0.0
    %112 = vmatpush.msra.mxu0 0.0
    %113 = vmatpush.msra.mxu0 0.0
    %114 = vmatpush.msra.mxu0 0.0
    %115 = vmatpush.msra.mxu0 0.0
    %116 = vmatpush.msra.mxu0 0.0
    %117 = vmatpush.msra.mxu0 0.0
    %118 = vmatpush.msra.mxu0 0.0
    %119 = vmatpush.msra.mxu0 0.0
    %120 = vmatpush.msra.mxu0 0.0
    %121 = vmatpush.msra.mxu0 0.0
    %122 = vmatpush.msra.mxu0 0.0
    %123 = vmatpush.msra.mxu0 %v15
    %124 = vmatpush.msra.mxu0 %v14
    %125 = vmatmul.f32.gmra.mxu0 %v107
    %v126 = vpop.f32.mrf.mxu0
    %v127 = vadd.f32 %v105, %v126
    %128 = vdwg.mxu0
    %v130 = vsel %vm75, 0.0, 0
    %132 = vmatpush.msra.mxu0 0.0
    %133 = vmatpush.msra.mxu0 0.0
    %134 = vmatpush.msra.mxu0 0.0
    %135 = vmatpush.msra.mxu0 0.0
    %136 = vmatpush.msra.mxu0 0.0
    %137 = vmatpush.msra.mxu0 0.0
    %138 = vmatpush.msra.mxu0 0.0
    %139 = vmatpush.msra.mxu0 0.0
    %140 = vmatpush.msra.mxu0 0.0
    %141 = vmatpush.msra.mxu0 0.0
    %142 = vmatpush.msra.mxu0 0.0
    %143 = vmatpush.msra.mxu0 0.0
    %144 = vmatpush.msra.mxu0 0.0
    %145 = vmatpush.msra.mxu0 0.0
    %146 = vmatpush.msra.mxu0 %v17
    %147 = vmatpush.msra.mxu0 %v16
    %148 = vmatmul.f32.gmra.mxu0 %v130
    %v149 = vpop.f32.mrf.mxu0
    %v150 = vadd.f32 0.0, %v149
    %151 = vdwg.mxu0
    %v152 = vadd.f32 %v100, %v150
    %v153 = vxor.u32 %v152, 2147483648
    %v154 = vmul.f32 %v153, 1.442695
    %v155 = vpow.pop %v154
    %v156 = vadd.f32 %v155, 1.0
    %v157 = vrcp.pop %v156
    %v158 = vmul.f32 %v156, %v157
    %v159 = vsub.f32 1.0, %v158
    %v160 = vmul.f32 %v157, %v159
    %v161 = vadd.f32 %v157, %v160
    %vm162 = vweird.f32 %v156
    %vm163 = vweird.f32 %v157
    %vm164 = vmor %vm162, %vm163
    %v165 = vsel %vm164, %v157, %v161
    %v166 = vand.u32 2147483647, %v156
    %vm167 = vcmp.eq.f32.partialorder %v166, 8.507059e+37
    %v168 = vand.u32 %v156, 2147483648
    %v169 = vor.u32 1.1754944e-38, %v168
    %v170 = vsel %vm167, %v169, %v165
    %v171 = vmul.f32 1.0, %v170
    %v172 = vperm.slane %v26, 2
    %174 = vrot.lane.b32.xlu0 %v172, 32
    %v175 = vpop.permute.xlu0 %174
    %v177 = vadd.f32 %v150, %v175
    %179 = vrot.lane.b32.xlu0 %v177, 96
    %v180 = vpop.permute.xlu0 %179
    %v182 = vmul.f32 %v171, %v180
    %184 = vrot.lane.b32.xlu0 %v182, 32
    %v185 = vpop.permute.xlu0 %184
    %v187 = vadd.f32 %v100, %v185
    %v188 = vtanh.pop %v187
    %v189 = vsub.f32 1.0, %v171
    %191 = vrot.lane.b32.xlu0 %v188, 112
    %v192 = vpop.permute.xlu0 %191
    %v194 = vmul.f32 %v189, %v192
    %v195 = vmul.f32 %v171, 0.0
    %v196 = vadd.f32 %v194, %v195
    %198 = vrot.lane.b32.xlu0 %v196, 112
    %v199 = vpop.permute.xlu0 %198
    %v200 = vsel %vm75, %v199, 0
    %202 = vmatpush.msra.mxu0 0.0
    %203 = vmatpush.msra.mxu0 0.0
    %204 = vmatpush.msra.mxu0 0.0
    %205 = vmatpush.msra.mxu0 0.0
    %206 = vmatpush.msra.mxu0 0.0
    %207 = vmatpush.msra.mxu0 0.0
    %208 = vmatpush.msra.mxu0 0.0
    %209 = vmatpush.msra.mxu0 0.0
    %210 = vmatpush.msra.mxu0 0.0
    %211 = vmatpush.msra.mxu0 0.0
    %212 = vmatpush.msra.mxu0 0.0
    %213 = vmatpush.msra.mxu0 0.0
    %214 = vmatpush.msra.mxu0 0.0
    %215 = vmatpush.msra.mxu0 0.0
    %216 = vmatpush.msra.mxu0 %v17
    %217 = vmatpush.msra.mxu0 %v16
    %218 = vmatmul.f32.gmra.mxu0 %v200
    %v219 = vpop.f32.mrf.mxu0
    %v220 = vadd.f32 0.0, %v219
    %221 = vdwg.mxu0
    %v223 = vrot.slane %v220, 6
    %v225 = vadd.f32 %v100, %v223
    %v226 = vxor.u32 %v225, 2147483648
    %v227 = vmul.f32 %v226, 1.442695
    %v228 = vpow.pop %v227
    %v229 = vadd.f32 %v228, 1.0
    %v230 = vrcp.pop %v229
    %v231 = vmul.f32 %v229, %v230
    %v232 = vsub.f32 1.0, %v231
    %v233 = vmul.f32 %v230, %v232
    %v234 = vadd.f32 %v230, %v233
    %vm235 = vweird.f32 %v229
    %vm236 = vweird.f32 %v230
    %vm237 = vmor %vm235, %vm236
    %v238 = vsel %vm237, %v230, %v234
    %v239 = vand.u32 2147483647, %v229
    %vm240 = vcmp.eq.f32.partialorder %v239, 8.507059e+37
    %v241 = vand.u32 %v229, 2147483648
    %v242 = vor.u32 1.1754944e-38, %v241
    %v243 = vsel %vm240, %v242, %v238
    %v244 = vmul.f32 1.0, %v243
    %v245 = vadd.f32 %v220, %v175
    %v247 = vrot.slane %v245, 6
    %248 = vrot.lane.b32.xlu0 %v247, 96
    %v249 = vpop.permute.xlu0 %248
    %v251 = vmul.f32 %v244, %v249
    %253 = vrot.lane.b32.xlu0 %v251, 32
    %v254 = vpop.permute.xlu0 %253
    %v256 = vadd.f32 %v100, %v254
    %v257 = vtanh.pop %v256
    %v258 = vsub.f32 1.0, %v244
    %260 = vrot.lane.b32.xlu0 %v257, 112
    %v261 = vpop.permute.xlu0 %260
    %v263 = vmul.f32 %v258, %v261
    %v264 = vrot.slane %v196, 6
    %v266 = vmul.f32 %v244, %v264
    %v267 = vadd.f32 %v263, %v266
    %v269 = vrot.slane %v267, 2
    %270 = vrot.lane.b32.xlu0 %v269, 112
    %v271 = vpop.permute.xlu0 %270
    %v272 = vsel %vm75, %v271, 0
    %274 = vmatpush.msra.mxu0 0.0
    %275 = vmatpush.msra.mxu0 0.0
    %276 = vmatpush.msra.mxu0 0.0
    %277 = vmatpush.msra.mxu0 0.0
    %278 = vmatpush.msra.mxu0 0.0
    %279 = vmatpush.msra.mxu0 0.0
    %280 = vmatpush.msra.mxu0 0.0
    %281 = vmatpush.msra.mxu0 0.0
    %282 = vmatpush.msra.mxu0 0.0
    %283 = vmatpush.msra.mxu0 0.0
    %284 = vmatpush.msra.mxu0 0.0
    %285 = vmatpush.msra.mxu0 0.0
    %286 = vmatpush.msra.mxu0 0.0
    %287 = vmatpush.msra.mxu0 0.0
    %288 = vmatpush.msra.mxu0 %v17
    %289 = vmatpush.msra.mxu0 %v16
    %290 = vmatmul.f32.gmra.mxu0 %v272
    %v291 = vpop.f32.mrf.mxu0
    %v292 = vadd.f32 0.0, %v291
    %293 = vdwg.mxu0
    %v295 = vrot.slane %v292, 4
    %v297 = vadd.f32 %v100, %v295
    %v298 = vxor.u32 %v297, 2147483648
    %v299 = vmul.f32 %v298, 1.442695
    %v300 = vpow.pop %v299
    %v301 = vadd.f32 %v300, 1.0
    %v302 = vrcp.pop %v301
    %v303 = vmul.f32 %v301, %v302
    %v304 = vsub.f32 1.0, %v303
    %v305 = vmul.f32 %v302, %v304
    %v306 = vadd.f32 %v302, %v305
    %vm307 = vweird.f32 %v301
    %vm308 = vweird.f32 %v302
    %vm309 = vmor %vm307, %vm308
    %v310 = vsel %vm309, %v302, %v306
    %v311 = vand.u32 2147483647, %v301
    %vm312 = vcmp.eq.f32.partialorder %v311, 8.507059e+37
    %v313 = vand.u32 %v301, 2147483648
    %v314 = vor.u32 1.1754944e-38, %v313
    %v315 = vsel %vm312, %v314, %v310
    %v316 = vmul.f32 1.0, %v315
    %v317 = vadd.f32 %v292, %v175
    %v319 = vrot.slane %v317, 4
    %320 = vrot.lane.b32.xlu0 %v319, 96
    %v321 = vpop.permute.xlu0 %320
    %v323 = vmul.f32 %v316, %v321
    %325 = vrot.lane.b32.xlu0 %v323, 32
    %v326 = vpop.permute.xlu0 %325
    %v328 = vadd.f32 %v100, %v326
    %v329 = vtanh.pop %v328
    %v330 = vsub.f32 1.0, %v316
    %332 = vrot.lane.b32.xlu0 %v329, 112
    %v333 = vpop.permute.xlu0 %332
    %v335 = vmul.f32 %v330, %v333
    %v336 = vrot.slane %v267, 6
    %v338 = vmul.f32 %v316, %v336
    %v339 = vadd.f32 %v335, %v338
    %v341 = vrot.slane %v339, 4
    %342 = vrot.lane.b32.xlu0 %v341, 112
    %v343 = vpop.permute.xlu0 %342
    %v344 = vsel %vm75, %v343, 0
    %346 = vmatpush.msra.mxu0 0.0
    %347 = vmatpush.msra.mxu0 0.0
    %348 = vmatpush.msra.mxu0 0.0
    %349 = vmatpush.msra.mxu0 0.0
    %350 = vmatpush.msra.mxu0 0.0
    %351 = vmatpush.msra.mxu0 0.0
    %352 = vmatpush.msra.mxu0 0.0
    %353 = vmatpush.msra.mxu0 0.0
    %354 = vmatpush.msra.mxu0 0.0
    %355 = vmatpush.msra.mxu0 0.0
    %356 = vmatpush.msra.mxu0 0.0
    %357 = vmatpush.msra.mxu0 0.0
    %358 = vmatpush.msra.mxu0 0.0
    %359 = vmatpush.msra.mxu0 0.0
    %360 = vmatpush.msra.mxu0 %v17
    %361 = vmatpush.msra.mxu0 %v16
    %362 = vmatmul.f32.gmra.mxu0 %v344
    %v363 = vpop.f32.mrf.mxu0
    %v364 = vadd.f32 0.0, %v363
    %365 = vdwg.mxu0
    %v367 = vrot.slane %v364, 2
    %v369 = vadd.f32 %v100, %v367
    %v370 = vxor.u32 %v369, 2147483648
    %v371 = vmul.f32 %v370, 1.442695
    %v372 = vpow.pop %v371
    %v373 = vadd.f32 %v372, 1.0
    %v374 = vrcp.pop %v373
    %v375 = vmul.f32 %v373, %v374
    %v376 = vsub.f32 1.0, %v375
    %v377 = vmul.f32 %v374, %v376
    %v378 = vadd.f32 %v374, %v377
    %vm379 = vweird.f32 %v373
    %vm380 = vweird.f32 %v374
    %vm381 = vmor %vm379, %vm380
    %v382 = vsel %vm381, %v374, %v378
    %v383 = vand.u32 2147483647, %v373
    %vm384 = vcmp.eq.f32.partialorder %v383, 8.507059e+37
    %v385 = vand.u32 %v373, 2147483648
    %v386 = vor.u32 1.1754944e-38, %v385
    %v387 = vsel %vm384, %v386, %v382
    %v388 = vmul.f32 1.0, %v387
    %v389 = vadd.f32 %v364, %v175
    %v391 = vrot.slane %v389, 2
    %392 = vrot.lane.b32.xlu0 %v391, 96
    %v393 = vpop.permute.xlu0 %392
    %v395 = vmul.f32 %v388, %v393
    %397 = vrot.lane.b32.xlu0 %v395, 32
    %v398 = vpop.permute.xlu0 %397
    %v400 = vadd.f32 %v100, %v398
    %v401 = vtanh.pop %v400
    %v402 = vsub.f32 1.0, %v388
    %404 = vrot.lane.b32.xlu0 %v401, 112
    %v405 = vpop.permute.xlu0 %404
    %v407 = vmul.f32 %v402, %v405
    %v408 = vrot.slane %v339, 6
    %v410 = vmul.f32 %v388, %v408
    %v411 = vadd.f32 %v407, %v410
    %v413 = vrot.slane %v411, 6
    %414 = vrot.lane.b32.xlu0 %v413, 112
    %v415 = vpop.permute.xlu0 %414
    %v416 = vsel %vm75, %v415, 0
    %418 = vmatpush.msra.mxu0 0.0
    %419 = vmatpush.msra.mxu0 0.0
    %420 = vmatpush.msra.mxu0 0.0
    %421 = vmatpush.msra.mxu0 0.0
    %422 = vmatpush.msra.mxu0 0.0
    %423 = vmatpush.msra.mxu0 0.0
    %424 = vmatpush.msra.mxu0 0.0
    %425 = vmatpush.msra.mxu0 0.0
    %426 = vmatpush.msra.mxu0 0.0
    %427 = vmatpush.msra.mxu0 0.0
    %428 = vmatpush.msra.mxu0 0.0
    %429 = vmatpush.msra.mxu0 0.0
    %430 = vmatpush.msra.mxu0 0.0
    %431 = vmatpush.msra.mxu0 0.0
    %432 = vmatpush.msra.mxu0 %v17
    %433 = vmatpush.msra.mxu0 %v16
    %434 = vmatmul.f32.gmra.mxu0 %v416
    %v435 = vpop.f32.mrf.mxu0
    %v436 = vadd.f32 0.0, %v435
    %437 = vdwg.mxu0
    %v438 = vadd.f32 %v103, %v436
    %v439 = vxor.u32 %v438, 2147483648
    %v440 = vmul.f32 %v439, 1.442695
    %v441 = vpow.pop %v440
    %v442 = vadd.f32 %v441, 1.0
    %v443 = vrcp.pop %v442
    %v444 = vmul.f32 %v442, %v443
    %v445 = vsub.f32 1.0, %v444
    %v446 = vmul.f32 %v443, %v445
    %v447 = vadd.f32 %v443, %v446
    %vm448 = vweird.f32 %v442
    %vm449 = vweird.f32 %v443
    %vm450 = vmor %vm448, %vm449
    %v451 = vsel %vm450, %v443, %v447
    %v452 = vand.u32 2147483647, %v442
    %vm453 = vcmp.eq.f32.partialorder %v452, 8.507059e+37
    %v454 = vand.u32 %v442, 2147483648
    %v455 = vor.u32 1.1754944e-38, %v454
    %v456 = vsel %vm453, %v455, %v451
    %v457 = vmul.f32 1.0, %v456
    %v458 = vadd.f32 %v436, %v175
    %460 = vrot.lane.b32.xlu0 %v458, 96
    %v461 = vpop.permute.xlu0 %460
    %v463 = vmul.f32 %v457, %v461
    %465 = vrot.lane.b32.xlu0 %v463, 32
    %v466 = vpop.permute.xlu0 %465
    %v468 = vadd.f32 %v103, %v466
    %v469 = vtanh.pop %v468
    %v470 = vsub.f32 1.0, %v457
    %472 = vrot.lane.b32.xlu0 %v469, 112
    %v473 = vpop.permute.xlu0 %472
    %v475 = vmul.f32 %v470, %v473
    %v477 = vmul.f32 %v457, %v413
    %v478 = vadd.f32 %v475, %v477
    %480 = vrot.lane.b32.xlu0 %v478, 112
    %v481 = vpop.permute.xlu0 %480
    %v482 = vsel %vm75, %v481, 0
    %484 = vmatpush.msra.mxu0 0.0
    %485 = vmatpush.msra.mxu0 0.0
    %486 = vmatpush.msra.mxu0 0.0
    %487 = vmatpush.msra.mxu0 0.0
    %488 = vmatpush.msra.mxu0 0.0
    %489 = vmatpush.msra.mxu0 0.0
    %490 = vmatpush.msra.mxu0 0.0
    %491 = vmatpush.msra.mxu0 0.0
    %492 = vmatpush.msra.mxu0 0.0
    %493 = vmatpush.msra.mxu0 0.0
    %494 = vmatpush.msra.mxu0 0.0
    %495 = vmatpush.msra.mxu0 0.0
    %496 = vmatpush.msra.mxu0 0.0
    %497 = vmatpush.msra.mxu0 0.0
    %498 = vmatpush.msra.mxu0 %v17
    %499 = vmatpush.msra.mxu0 %v16
    %500 = vmatmul.f32.gmra.mxu0 %v482
    %v501 = vpop.f32.mrf.mxu0
    %v502 = vadd.f32 0.0, %v501
    %503 = vdwg.mxu0
    %v505 = vrot.slane %v502, 6
    %v507 = vadd.f32 %v103, %v505
    %v508 = vxor.u32 %v507, 2147483648
    %v509 = vmul.f32 %v508, 1.442695
    %v510 = vpow.pop %v509
    %v511 = vadd.f32 %v510, 1.0
    %v512 = vrcp.pop %v511
    %v513 = vmul.f32 %v511, %v512
    %v514 = vsub.f32 1.0, %v513
    %v515 = vmul.f32 %v512, %v514
    %v516 = vadd.f32 %v512, %v515
    %vm517 = vweird.f32 %v511
    %vm518 = vweird.f32 %v512
    %vm519 = vmor %vm517, %vm518
    %v520 = vsel %vm519, %v512, %v516
    %v521 = vand.u32 2147483647, %v511
    %vm522 = vcmp.eq.f32.partialorder %v521, 8.507059e+37
    %v523 = vand.u32 %v511, 2147483648
    %v524 = vor.u32 1.1754944e-38, %v523
    %v525 = vsel %vm522, %v524, %v520
    %v526 = vmul.f32 1.0, %v525
    %v527 = vadd.f32 %v502, %v175
    %v529 = vrot.slane %v527, 6
    %530 = vrot.lane.b32.xlu0 %v529, 96
    %v531 = vpop.permute.xlu0 %530
    %v533 = vmul.f32 %v526, %v531
    %535 = vrot.lane.b32.xlu0 %v533, 32
    %v536 = vpop.permute.xlu0 %535
    %v538 = vadd.f32 %v103, %v536
    %v539 = vtanh.pop %v538
    %v540 = vsub.f32 1.0, %v526
    %542 = vrot.lane.b32.xlu0 %v539, 112
    %v543 = vpop.permute.xlu0 %542
    %v545 = vmul.f32 %v540, %v543
    %v546 = vrot.slane %v478, 6
    %v548 = vmul.f32 %v526, %v546
    %v549 = vadd.f32 %v545, %v548
    %v551 = vrot.slane %v549, 2
    %552 = vrot.lane.b32.xlu0 %v551, 112
    %v553 = vpop.permute.xlu0 %552
    %v554 = vsel %vm75, %v553, 0
    %556 = vmatpush.msra.mxu0 0.0
    %557 = vmatpush.msra.mxu0 0.0
    %558 = vmatpush.msra.mxu0 0.0
    %559 = vmatpush.msra.mxu0 0.0
    %560 = vmatpush.msra.mxu0 0.0
    %561 = vmatpush.msra.mxu0 0.0
    %562 = vmatpush.msra.mxu0 0.0
    %563 = vmatpush.msra.mxu0 0.0
    %564 = vmatpush.msra.mxu0 0.0
    %565 = vmatpush.msra.mxu0 0.0
    %566 = vmatpush.msra.mxu0 0.0
    %567 = vmatpush.msra.mxu0 0.0
    %568 = vmatpush.msra.mxu0 0.0
    %569 = vmatpush.msra.mxu0 0.0
    %570 = vmatpush.msra.mxu0 %v17
    %571 = vmatpush.msra.mxu0 %v16
    %572 = vmatmul.f32.gmra.mxu0 %v554
    %v573 = vpop.f32.mrf.mxu0
    %v574 = vadd.f32 0.0, %v573
    %575 = vdwg.mxu0
    %v577 = vrot.slane %v574, 4
    %v579 = vadd.f32 %v103, %v577
    %v580 = vxor.u32 %v579, 2147483648
    %v581 = vmul.f32 %v580, 1.442695
    %v582 = vpow.pop %v581
    %v583 = vadd.f32 %v582, 1.0
    %v584 = vrcp.pop %v583
    %v585 = vmul.f32 %v583, %v584
    %v586 = vsub.f32 1.0, %v585
    %v587 = vmul.f32 %v584, %v586
    %v588 = vadd.f32 %v584, %v587
    %vm589 = vweird.f32 %v583
    %vm590 = vweird.f32 %v584
    %vm591 = vmor %vm589, %vm590
    %v592 = vsel %vm591, %v584, %v588
    %v593 = vand.u32 2147483647, %v583
    %vm594 = vcmp.eq.f32.partialorder %v593, 8.507059e+37
    %v595 = vand.u32 %v583, 2147483648
    %v596 = vor.u32 1.1754944e-38, %v595
    %v597 = vsel %vm594, %v596, %v592
    %v598 = vmul.f32 1.0, %v597
    %v599 = vadd.f32 %v574, %v175
    %v601 = vrot.slane %v599, 4
    %602 = vrot.lane.b32.xlu0 %v601, 96
    %v603 = vpop.permute.xlu0 %602
    %v605 = vmul.f32 %v598, %v603
    %607 = vrot.lane.b32.xlu0 %v605, 32
    %v608 = vpop.permute.xlu0 %607
    %v610 = vadd.f32 %v103, %v608
    %v611 = vtanh.pop %v610
    %v612 = vsub.f32 1.0, %v598
    %614 = vrot.lane.b32.xlu0 %v611, 112
    %v615 = vpop.permute.xlu0 %614
    %v617 = vmul.f32 %v612, %v615
    %v618 = vrot.slane %v549, 6
    %v620 = vmul.f32 %v598, %v618
    %v621 = vadd.f32 %v617, %v620
    %v623 = vrot.slane %v621, 4
    %624 = vrot.lane.b32.xlu0 %v623, 112
    %v625 = vpop.permute.xlu0 %624
    %v626 = vsel %vm75, %v625, 0
    %628 = vmatpush.msra.mxu0 0.0
    %629 = vmatpush.msra.mxu0 0.0
    %630 = vmatpush.msra.mxu0 0.0
    %631 = vmatpush.msra.mxu0 0.0
    %632 = vmatpush.msra.mxu0 0.0
    %633 = vmatpush.msra.mxu0 0.0
    %634 = vmatpush.msra.mxu0 0.0
    %635 = vmatpush.msra.mxu0 0.0
    %636 = vmatpush.msra.mxu0 0.0
    %637 = vmatpush.msra.mxu0 0.0
    %638 = vmatpush.msra.mxu0 0.0
    %639 = vmatpush.msra.mxu0 0.0
    %640 = vmatpush.msra.mxu0 0.0
    %641 = vmatpush.msra.mxu0 0.0
    %642 = vmatpush.msra.mxu0 %v17
    %643 = vmatpush.msra.mxu0 %v16
    %644 = vmatmul.f32.gmra.mxu0 %v626
    %v645 = vpop.f32.mrf.mxu0
    %v646 = vadd.f32 0.0, %v645
    %647 = vdwg.mxu0
    %v649 = vrot.slane %v646, 2
    %v651 = vadd.f32 %v103, %v649
    %v652 = vxor.u32 %v651, 2147483648
    %v653 = vmul.f32 %v652, 1.442695
    %v654 = vpow.pop %v653
    %v655 = vadd.f32 %v654, 1.0
    %v656 = vrcp.pop %v655
    %v657 = vmul.f32 %v655, %v656
    %v658 = vsub.f32 1.0, %v657
    %v659 = vmul.f32 %v656, %v658
    %v660 = vadd.f32 %v656, %v659
    %vm661 = vweird.f32 %v655
    %vm662 = vweird.f32 %v656
    %vm663 = vmor %vm661, %vm662
    %v664 = vsel %vm663, %v656, %v660
    %v665 = vand.u32 2147483647, %v655
    %vm666 = vcmp.eq.f32.partialorder %v665, 8.507059e+37
    %v667 = vand.u32 %v655, 2147483648
    %v668 = vor.u32 1.1754944e-38, %v667
    %v669 = vsel %vm666, %v668, %v664
    %v670 = vmul.f32 1.0, %v669
    %v671 = vadd.f32 %v646, %v175
    %v673 = vrot.slane %v671, 2
    %674 = vrot.lane.b32.xlu0 %v673, 96
    %v675 = vpop.permute.xlu0 %674
    %v677 = vmul.f32 %v670, %v675
    %679 = vrot.lane.b32.xlu0 %v677, 32
    %v680 = vpop.permute.xlu0 %679
    %v682 = vadd.f32 %v103, %v680
    %v683 = vtanh.pop %v682
    %v684 = vsub.f32 1.0, %v670
    %686 = vrot.lane.b32.xlu0 %v683, 112
    %v687 = vpop.permute.xlu0 %686
    %v689 = vmul.f32 %v684, %v687
    %v690 = vrot.slane %v621, 6
    %v692 = vmul.f32 %v670, %v690
    %v693 = vadd.f32 %v689, %v692
    %v694 = vxor.u32 %v127, 2147483648
    %v695 = vmul.f32 %v694, 1.442695
    %v696 = vpow.pop %v695
    %v697 = vadd.f32 %v696, 1.0
    %v698 = vrcp.pop %v697
    %v699 = vmul.f32 %v697, %v698
    %v700 = vsub.f32 1.0, %v699
    %v701 = vmul.f32 %v698, %v700
    %v702 = vadd.f32 %v698, %v701
    %vm703 = vweird.f32 %v697
    %vm704 = vweird.f32 %v698
    %vm705 = vmor %vm703, %vm704
    %v706 = vsel %vm705, %v698, %v702
    %v707 = vand.u32 2147483647, %v697
    %vm708 = vcmp.eq.f32.partialorder %v707, 8.507059e+37
    %v709 = vand.u32 %v697, 2147483648
    %v710 = vor.u32 1.1754944e-38, %v709
    %v711 = vsel %vm708, %v710, %v706
    %v712 = vmul.f32 1.0, %v711
    %v713 = vperm.slane %v26, 3
    %v714 = vmul.f32 %v712, %v713
    %716 = vrot.lane.b32.xlu0 %v714, 32
    %v717 = vpop.permute.xlu0 %716
    %v719 = vadd.f32 %v127, %v717
    %v720 = vtanh.pop %v719
    %v721 = vsub.f32 1.0, %v712
    %723 = vrot.lane.b32.xlu0 %v720, 112
    %v724 = vpop.permute.xlu0 %723
    %v726 = vmul.f32 %v721, %v724
    %728 = vrot.lane.b32.xlu0 %v726, 112
    %v729 = vpop.permute.xlu0 %728
    %v730 = vsel %vm75, %v729, 0
    %732 = vmatpush.msra.mxu0 0.0
    %733 = vmatpush.msra.mxu0 0.0
    %734 = vmatpush.msra.mxu0 0.0
    %735 = vmatpush.msra.mxu0 0.0
    %736 = vmatpush.msra.mxu0 0.0
    %737 = vmatpush.msra.mxu0 0.0
    %738 = vmatpush.msra.mxu0 0.0
    %739 = vmatpush.msra.mxu0 0.0
    %740 = vmatpush.msra.mxu0 0.0
    %741 = vmatpush.msra.mxu0 0.0
    %742 = vmatpush.msra.mxu0 0.0
    %743 = vmatpush.msra.mxu0 0.0
    %744 = vmatpush.msra.mxu0 0.0
    %745 = vmatpush.msra.mxu0 0.0
    %746 = vmatpush.msra.mxu0 %v21
    %747 = vmatpush.msra.mxu0 %v20
    %748 = vmatmul.f32.gmra.mxu0 %v730
    %v749 = vpop.f32.mrf.mxu0
    %v750 = vadd.f32 0.0, %v749
    %751 = vdwg.mxu0
    %v753 = vrot.slane %v693, 6
    %754 = vrot.lane.b32.xlu0 %v753, 112
    %v755 = vpop.permute.xlu0 %754
    %v756 = vsel %vm75, %v755, 0
    %758 = vmatpush.msra.mxu0 0.0
    %759 = vmatpush.msra.mxu0 0.0
    %760 = vmatpush.msra.mxu0 0.0
    %761 = vmatpush.msra.mxu0 0.0
    %762 = vmatpush.msra.mxu0 0.0
    %763 = vmatpush.msra.mxu0 0.0
    %764 = vmatpush.msra.mxu0 0.0
    %765 = vmatpush.msra.mxu0 0.0
    %766 = vmatpush.msra.mxu0 0.0
    %767 = vmatpush.msra.mxu0 0.0
    %768 = vmatpush.msra.mxu0 0.0
    %769 = vmatpush.msra.mxu0 0.0
    %770 = vmatpush.msra.mxu0 0.0
    %771 = vmatpush.msra.mxu0 0.0
    %772 = vmatpush.msra.mxu0 %v19
    %773 = vmatpush.msra.mxu0 %v18
    %774 = vmatmul.f32.gmra.mxu0 %v756
    %v775 = vpop.f32.mrf.mxu0
    %v776 = vadd.f32 %v750, %v775
    %777 = vdwg.mxu0
    %v778 = vperm.slane %v26, 4
    %v779 = vadd.f32 %v776, %v778
    %vm780 = vcmask 254976
    %v781 = vsel %vm780, %v779, 0.0
    %v782 = vrot.slane %v781, 4
    %v783 = vadd.f32 %v781, %v782
    %v784 = vrot.slane %v783, 2
    %v785 = vadd.f32 %v783, %v784
    %v786 = vrot.slane %v785, 1
    %v787 = vadd.f32 %v785, %v786
    %v788 = vrcp.pop 2.0
    %v789 = vmul.f32 2.0, %v788
    %v790 = vsub.f32 1.0, %v789
    %v791 = vmul.f32 %v788, %v790
    %v792 = vadd.f32 %v788, %v791
    %vm793 = vweird.f32 %v788
    %v794 = vsel %vm793, %v788, %v792
    %v795 = vmul.f32 %v787, %v794
    %v796 = vsub.f32 %v779, %v795
    %v797 = vmul.f32 %v796, %v796
    %v798 = vsel %vm780, %v797, 0.0
    %v799 = vrot.slane %v798, 4
    %v800 = vadd.f32 %v798, %v799
    %v801 = vrot.slane %v800, 2
    %v802 = vadd.f32 %v800, %v801
    %v803 = vrot.slane %v802, 1
    %v804 = vadd.f32 %v802, %v803
    %v805 = vmul.f32 %v804, %v794
    %v806 = vadd.f32 %v805, 1e-05
    %v807 = vrsqrt.pop %v806
    %v808 = vmul.f32 %v807, %v806
    %v809 = vmul.f32 %v808, %v807
    %v810 = vmul.f32 0.5, %v809
    %v811 = vsub.f32 1.5, %v810
    %v812 = vmul.f32 %v807, %v811
    %vm813 = vweird.f32 %v806
    %vm814 = vweird.f32 %v807
    %vm815 = vmor %vm813, %vm814
    %v816 = vsel %vm815, %v807, %v812
    %v817 = vmul.f32 %v796, %v816
    %v818 = vperm.slane %v26, 5
    %v819 = vmul.f32 %v817, %v818
    %v820 = vperm.slane %v26, 6
    %v821 = vadd.f32 %v819, %v820
    %v822 = vperm.slane %v26, 7
    %vm823 = vcmask 261120
    %v825 = vsel %vm823, %v821, 0
    %827 = vmatpush.msra.mxu0 0.0
    %828 = vmatpush.msra.mxu0 0.0
    %829 = vmatpush.msra.mxu0 0.0
    %830 = vmatpush.msra.mxu0 0.0
    %831 = vmatpush.msra.mxu0 0.0
    %832 = vmatpush.msra.mxu0 0.0
    %833 = vmatpush.msra.mxu0 0.0
    %834 = vmatpush.msra.mxu0 0.0
    %835 = vmatpush.msra.mxu0 0.0
    %836 = vmatpush.msra.mxu0 0.0
    %837 = vmatpush.msra.mxu0 0.0
    %838 = vmatpush.msra.mxu0 0.0
    %839 = vmatpush.msra.mxu0 %v25
    %840 = vmatpush.msra.mxu0 %v24
    %841 = vmatpush.msra.mxu0 %v23
    %842 = vmatpush.msra.mxu0 %v22
    %843 = vmatmul.f32.gmra.mxu0 %v825
    %v844 = vpop.f32.mrf.mxu0
    %v845 = vadd.f32 %v822, %v844
    %846 = vdwg.mxu0
    %847 = vst.msk [vmem:[#allocation2] sm:$0x3] %vm780, %v845
    // Predicated region
    $region10: #{tpu_custom_call.1} parent=1 // pred_check
      _
    $region11: #{tpu_custom_call.1} parent=1 // pred_check_branch
      %849 = sbr.rel (0) target = $region13
    $region12: #{tpu_custom_call.1} parent=1 // pred_region
      %851 = vsyncadd [#allocation3], 0
      %s853 = sshll.u32 [#allocation2], 4
      %s854 = int_to_ptr.vmem [resolvable:$true] %s853
      %s855 = sshll.u32 %s2, 4
      %s856 = int_to_ptr.hbm [resolvable:$true] %s855
      %858 = dma.vmem_to_hbm [thread:$0]  %s854, 32, %s856, [#allocation3]
    $region13: #{tpu_custom_call.1} parent=1 // pred_fallthru
      _
    // Predicated region
    $region14: #{tpu_custom_call.1} parent=1 // pred_check
      _
    $region15: #{tpu_custom_call.1} parent=1 // pred_check_branch
      %860 = sbr.rel (0) target = $region17
    $region16: #{tpu_custom_call.1} parent=1 // pred_region
      %862 = dma.done [#allocation3], 32
    $region17: #{tpu_custom_call.1} parent=1 // pred_fallthru
      _
    %863 = vsyncpa [#allocation3], 1

</llo_original>
